<compile_context>
chip_gen: v5e
topology: v5e:2x2
jax: 0.10.0
libtpu: 0.0.40
codegen_flags: <defaults>
</compile_context>

<pallas_src>
import jax
import jax.numpy as jnp
from jax.experimental import pallas as pl
from jax.experimental.pallas import tpu as pltpu


def _attention_kernel(feats_ref, att2_ref, wf_ref, wa_ref, ba_ref, out_ref):
    tb, n, f = feats_ref.shape
    a = wf_ref.shape[1]

    feats = feats_ref[...]                                        # (TB, N, F)

    # att1 = features_att(image_features): single (TB*N, F) @ (F, A) MXU matmul.
    att1 = jnp.dot(feats.reshape(tb * n, f), wf_ref[...],
                   preferred_element_type=jnp.float32)            # (TB*N, A)

    # relu(att1 + att2); att2 already carries both biases (hoisted into the wrapper).
    act = jnp.maximum(
        att1.reshape(tb, n, a) + att2_ref[...].astype(jnp.float32)[:, None, :],
        0.0)                                                      # (TB, N, A)

    # full_att: width-1 MXU matmul replaced by VPU multiply + lane reduce.
    # Scores land lane-dense as (TB, N).
    e = jnp.sum(act * wa_ref[...].astype(jnp.float32)[None, :, :], axis=-1)
    e = e + ba_ref[...].astype(jnp.float32)                       # (TB, N), ba broadcasts

    # softmax over the region axis N (lane axis).
    m = jnp.max(e, axis=-1, keepdims=True)
    p = jnp.exp(e - m)
    alpha = p * pl.reciprocal(jnp.sum(p, axis=-1, keepdims=True), approx=False)  # (TB, N)

    # attention_weighted_encoding: batched (1, N) @ (N, F) -> lane-dense (TB, F).
    out = jnp.einsum('bqn,bnf->bqf',
                     alpha[:, None, :].astype(feats.dtype), feats,
                     preferred_element_type=jnp.float32)          # (TB, 1, F)
    out_ref[...] = out[:, 0, :].astype(out_ref.dtype)


def attention_forward(image_features, decoder_hidden,
                      wf, bf, wd, bd, wa, ba, *, tb=None):
    """image_features: (B, N, F), decoder_hidden: (B, D).
    wf: (F, A), bf: (1, A), wd: (D, A), bd: (1, A), wa: (1, A), ba: (1, 1).
    Returns (B, F)."""
    B, N, F = image_features.shape
    A = wf.shape[1]

    if tb is None:
        # >= 2 parallel grid steps when possible (v7x has 2 TensorCores),
        # otherwise one big block.
        tb = B // 2 if (B >= 2 and B % 2 == 0) else B
    assert B % tb == 0, "tb must divide B"
    grid = (B // tb,)

    # Hoist decoder_att out of the kernel: one batched matmul, biases folded in.
    att2b = decoder_hidden @ wd + bd + bf                         # (B, A)

    itemsize = image_features.dtype.itemsize
    cost = pl.CostEstimate(
        flops=2 * B * N * F * A + 2 * B * N * A + 2 * B * N * F,
        transcendentals=B * N,
        bytes_accessed=(image_features.size * itemsize
                        + att2b.size * att2b.dtype.itemsize
                        + wf.size * wf.dtype.itemsize
                        + wa.size * wa.dtype.itemsize
                        + ba.size * ba.dtype.itemsize
                        + B * F * itemsize),
    )

    grid_spec = pltpu.PrefetchScalarGridSpec(
        num_scalar_prefetch=0,
        grid=grid,
        in_specs=[
            pl.BlockSpec((tb, N, F), lambda b: (b, 0, 0)),   # image_features (per block of batches)
            pl.BlockSpec((tb, A), lambda b: (b, 0)),         # hoisted att2 (+ biases)
            pl.BlockSpec((F, A), lambda b: (0, 0)),          # Wf (replicated)
            pl.BlockSpec((1, A), lambda b: (0, 0)),          # wa row
            pl.BlockSpec((1, 1), lambda b: (0, 0)),          # ba
        ],
        out_specs=pl.BlockSpec((tb, F), lambda b: (b, 0)),
    )

    return pl.pallas_call(
        _attention_kernel,
        out_shape=jax.ShapeDtypeStruct((B, F), image_features.dtype),
        grid_spec=grid_spec,
        cost_estimate=cost,
        compiler_params=pltpu.CompilerParams(
            dimension_semantics=("parallel",)),
    )(image_features, att2b, wf, wa, ba)


def weight_norm_effective(v, g):
    """PyTorch weight_norm (dim=0): w[i,:] = g[i] * v[i,:] / ||v[i,:]||.
    v: (out, in), g: (out,). Returns effective weight (out, in)."""
    norm = jnp.sqrt(jnp.sum(v * v, axis=1, keepdims=True))
    return v * (g[:, None] / norm)


def make_params(key, features_dim, decoder_dim, attention_dim):
    ks = jax.random.split(key, 9)
    # weight_norm(Linear) parameters: v (out,in), g (out,), bias (out,)
    vf = jax.random.normal(ks[0], (attention_dim, features_dim), jnp.float32) * 0.1
    gf = 1.0 + 0.1 * jax.random.normal(ks[1], (attention_dim,), jnp.float32)
    bf = jax.random.normal(ks[2], (attention_dim,), jnp.float32) * 0.1

    vd = jax.random.normal(ks[3], (attention_dim, decoder_dim), jnp.float32) * 0.1
    gd = 1.0 + 0.1 * jax.random.normal(ks[4], (attention_dim,), jnp.float32)
    bd = jax.random.normal(ks[5], (attention_dim,), jnp.float32) * 0.1

    va = jax.random.normal(ks[6], (1, attention_dim), jnp.float32) * 0.1
    ga = 1.0 + 0.1 * jax.random.normal(ks[7], (1,), jnp.float32)
    ba = jax.random.normal(ks[8], (1,), jnp.float32) * 0.1

    Wf = weight_norm_effective(vf, gf)   # (A, F)
    Wd = weight_norm_effective(vd, gd)   # (A, D)
    Wa = weight_norm_effective(va, ga)   # (1, A)

    # x @ W layout used by kernel / wrapper.
    return dict(
        wf=Wf.T,                  # (F, A)
        bf=bf.reshape(1, -1),     # (1, A)
        wd=Wd.T,                  # (D, A)
        bd=bd.reshape(1, -1),     # (1, A)
        wa=Wa,                    # (1, A) row form
        ba=ba.reshape(1, 1),      # (1, 1)
    )


def reference_forward(image_features, decoder_hidden, p):
    att1 = image_features @ p["wf"] + p["bf"]                    # (B, N, A)
    att2 = decoder_hidden @ p["wd"] + p["bd"]                    # (B, A)
    act = jnp.maximum(att1 + att2[:, None, :], 0.0)
    att = (act @ p["wa"].T + p["ba"])[..., 0]                    # (B, N)
    alpha = jax.nn.softmax(att, axis=1)
    return jnp.sum(image_features * alpha[..., None], axis=1)    # (B, F)


if __name__ == "__main__":
    # Small, tile-aligned shapes: B=16 batches (TB=8 per grid step, 2 parallel steps),
    # N=8 regions, F=128 feature dim (lane-dense output), D=64 decoder dim, A=128 attn dim.
    B, N, F, D, A = 16, 8, 128, 64, 128
    key = jax.random.PRNGKey(0)
    k_feat, k_hid, k_par = jax.random.split(key, 3)

    image_features = jax.random.normal(k_feat, (B, N, F), jnp.float32)
    decoder_hidden = jax.random.normal(k_hid, (B, D), jnp.float32)
    params = make_params(k_par, F, D, A)

    out = attention_forward(image_features, decoder_hidden,
                            params["wf"], params["bf"],
                            params["wd"], params["bd"],
                            params["wa"], params["ba"])
    out = jax.block_until_ready(out)

    ref = reference_forward(image_features, decoder_hidden, params)
    assert out.shape == (B, F)
    assert jnp.allclose(out, ref, atol=1e-4, rtol=1e-4), "mismatch vs reference"

    print("KERNEL_OK")
</pallas_src>

<mosaic_0001>
module attributes {stable_mosaic.version = 11 : i64} {
  func.func @_attention_kernel(%arg0: i32, %arg1: memref<8x8x128xf32, #tpu.memory_space<vmem>>, %arg2: memref<8x128xf32, #tpu.memory_space<vmem>>, %arg3: memref<128x128xf32, #tpu.memory_space<vmem>>, %arg4: memref<1x128xf32, #tpu.memory_space<vmem>>, %arg5: memref<1x1xf32, #tpu.memory_space<vmem>>, %arg6: memref<8x128xf32, #tpu.memory_space<vmem>>) attributes {dimension_semantics = [#tpu.dimension_semantics<parallel>], iteration_bounds = array<i64: 2>, scalar_prefetch = 0 : i64, scratch_operands = 0 : i64, tpu.core_type = #tpu.core_type<tc>, window_params = [{transform_indices = @transform_0, window_bounds = array<i64: 8, 8, 128>}, {transform_indices = @transform_1, window_bounds = array<i64: 8, 128>}, {pipeline_mode = #tpu.pipeline_mode<synchronous>, transform_indices = @transform_2, window_bounds = array<i64: 128, 128>}, {pipeline_mode = #tpu.pipeline_mode<synchronous>, transform_indices = @transform_3, window_bounds = array<i64: 1, 128>}, {pipeline_mode = #tpu.pipeline_mode<synchronous>, transform_indices = @transform_4, window_bounds = array<i64: 1, 1>}, {transform_indices = @transform_5, window_bounds = array<i64: 8, 128>}]} {
    %c0 = arith.constant 0 : index
    %c0_0 = arith.constant 0 : index
    %c0_1 = arith.constant 0 : index
    %0 = vector.load %arg1[%c0, %c0_0, %c0_1] : memref<8x8x128xf32, #tpu.memory_space<vmem>>, vector<8x8x128xf32>
    %1 = vector.shape_cast %0 : vector<8x8x128xf32> to vector<64x128xf32>
    %c0_2 = arith.constant 0 : index
    %c0_3 = arith.constant 0 : index
    %2 = vector.load %arg3[%c0_2, %c0_3] : memref<128x128xf32, #tpu.memory_space<vmem>>, vector<128x128xf32>
    %cst = arith.constant dense<0.000000e+00> : vector<64x128xf32>
    %3 = tpu.matmul %1, %2, %cst {dimension_numbers = #tpu.dot_dimension_numbers<[1], [0], [0], [1], [0, 0, 1, 1], [], []>} : vector<64x128xf32>, vector<128x128xf32>, vector<64x128xf32> -> vector<64x128xf32>
    %4 = vector.shape_cast %3 : vector<64x128xf32> to vector<8x8x128xf32>
    %c0_4 = arith.constant 0 : index
    %c0_5 = arith.constant 0 : index
    %5 = vector.load %arg2[%c0_4, %c0_5] : memref<8x128xf32, #tpu.memory_space<vmem>>, vector<8x128xf32>
    %6 = vector.shape_cast %5 : vector<8x128xf32> to vector<8x1x128xf32>
    %7 = vector.broadcast %6 : vector<8x1x128xf32> to vector<8x8x128xf32>
    %8 = arith.addf %4, %7 : vector<8x8x128xf32>
    %cst_6 = arith.constant 0.000000e+00 : f32
    %9 = vector.broadcast %cst_6 : f32 to vector<8x8x128xf32>
    %10 = arith.maximumf %8, %9 : vector<8x8x128xf32>
    %c0_7 = arith.constant 0 : index
    %c0_8 = arith.constant 0 : index
    %11 = vector.load %arg4[%c0_7, %c0_8] : memref<1x128xf32, #tpu.memory_space<vmem>>, vector<1x128xf32>
    %12 = vector.shape_cast %11 : vector<1x128xf32> to vector<1x1x128xf32>
    %13 = vector.broadcast %12 : vector<1x1x128xf32> to vector<8x8x128xf32>
    %14 = arith.mulf %10, %13 : vector<8x8x128xf32>
    %cst_9 = arith.constant dense<0.000000e+00> : vector<8x8xf32>
    %15 = vector.multi_reduction <add>, %14, %cst_9 [2] : vector<8x8x128xf32> to vector<8x8xf32>
    %c0_10 = arith.constant 0 : index
    %c0_11 = arith.constant 0 : index
    %16 = vector.load %arg5[%c0_10, %c0_11] : memref<1x1xf32, #tpu.memory_space<vmem>>, vector<1x1xf32>
    %17 = vector.broadcast %16 : vector<1x1xf32> to vector<8x8xf32>
    %18 = arith.addf %15, %17 : vector<8x8xf32>
    %cst_12 = arith.constant dense<0xFF800000> : vector<8xf32>
    %19 = vector.multi_reduction <maximumf>, %18, %cst_12 [1] : vector<8x8xf32> to vector<8xf32>
    %20 = vector.shape_cast %19 : vector<8xf32> to vector<8x1xf32>
    %21 = vector.broadcast %20 : vector<8x1xf32> to vector<8x8xf32>
    %22 = arith.subf %18, %21 : vector<8x8xf32>
    %23 = math.exp %22 : vector<8x8xf32>
    %cst_13 = arith.constant dense<0.000000e+00> : vector<8xf32>
    %24 = vector.multi_reduction <add>, %23, %cst_13 [1] : vector<8x8xf32> to vector<8xf32>
    %25 = vector.shape_cast %24 : vector<8xf32> to vector<8x1xf32>
    %26 = tpu.reciprocal %25 : vector<8x1xf32> -> vector<8x1xf32>
    %27 = vector.broadcast %26 : vector<8x1xf32> to vector<8x8xf32>
    %28 = arith.mulf %23, %27 : vector<8x8xf32>
    %29 = vector.shape_cast %28 : vector<8x8xf32> to vector<8x1x8xf32>
    "tpu.trace_start"() <{level = 10 : i32, message = "bqn,bnf->bqf"}> : () -> ()
    %cst_14 = arith.constant dense<0.000000e+00> : vector<8x1x128xf32>
    %30 = tpu.matmul %29, %0, %cst_14 {dimension_numbers = #tpu.dot_dimension_numbers<[2], [1], [1], [2], [0, 0, 0, 1, 1, 2], [0], [0]>} : vector<8x1x8xf32>, vector<8x8x128xf32>, vector<8x1x128xf32> -> vector<8x1x128xf32>
    "tpu.trace_stop"() : () -> ()
    %31 = vector.shape_cast %30 : vector<8x1x128xf32> to vector<8x128xf32>
    %c0_15 = arith.constant 0 : index
    %c0_16 = arith.constant 0 : index
    %32 = vector.load %arg6[%c0_15, %c0_16] : memref<8x128xf32, #tpu.memory_space<vmem>>, vector<8x128xf32>
    tpu.vector_store %arg6[%c0_15, %c0_16], %31 {strides = array<i32>} : memref<8x128xf32, #tpu.memory_space<vmem>>, vector<8x128xf32>,
    return
  }
  func.func @transform_0(%arg0: i32) -> (i32, i32, i32) {
    %c0_i32 = arith.constant 0 : i32
    %c0_i32_0 = arith.constant 0 : i32
    %c0_i32_1 = arith.constant 0 : i32
    return %arg0, %c0_i32, %c0_i32_0 : i32, i32, i32
  }
  func.func @transform_1(%arg0: i32) -> (i32, i32) {
    %c0_i32 = arith.constant 0 : i32
    %c0_i32_0 = arith.constant 0 : i32
    return %arg0, %c0_i32 : i32, i32
  }
  func.func @transform_2(%arg0: i32) -> (i32, i32) {
    %c0_i32 = arith.constant 0 : i32
    %c0_i32_0 = arith.constant 0 : i32
    %c0_i32_1 = arith.constant 0 : i32
    return %c0_i32, %c0_i32_0 : i32, i32
  }
  func.func @transform_3(%arg0: i32) -> (i32, i32) {
    %c0_i32 = arith.constant 0 : i32
    %c0_i32_0 = arith.constant 0 : i32
    %c0_i32_1 = arith.constant 0 : i32
    return %c0_i32, %c0_i32_0 : i32, i32
  }
  func.func @transform_4(%arg0: i32) -> (i32, i32) {
    %c0_i32 = arith.constant 0 : i32
    %c0_i32_0 = arith.constant 0 : i32
    %c0_i32_1 = arith.constant 0 : i32
    return %c0_i32, %c0_i32_0 : i32, i32
  }
  func.func @transform_5(%arg0: i32) -> (i32, i32) {
    %c0_i32 = arith.constant 0 : i32
    %c0_i32_0 = arith.constant 0 : i32
    return %arg0, %c0_i32 : i32, i32
  }
}

</mosaic_0001>

<llo_original>
// kernel: tpu_custom_call.1
$region0: #{tpu_custom_call.1}
  #allocation0 [shape = 'u32[]', space=smem, size = 0x4, offset = 0x4, fixed_abs, tag = 'smem constant byte address 0x4 - core index']
  #allocation1 [shape = 'u32[72,128]{1,0:T(1,128)}', space=vmem, size = 0x9000, scoped, tag = 'internal scratch']
  #allocation2 [shape = 'f32[1,1]{1,0:T(1,128)S(1)}', space=vmem, size = 0x200, scoped, tag = 'scoped memory for tpu_custom_call.1']
  %s0 = inlined_call_operand.hbm [shape: f32[16,8,128], index: 0, kind: input, shape index: {}]
  %s1 = inlined_call_operand.hbm [shape: f32[16,128], index: 1, kind: input, shape index: {}]
  %s2 = inlined_call_operand.hbm [shape: f32[128,128], index: 2, kind: input, shape index: {}]
  %s3 = inlined_call_operand.vmem [shape: f32[1,128], index: 3, kind: input, shape index: {}]
  %s4 = inlined_call_operand.<no memory space> [shape: f32[1,1], index: 4, kind: input, shape index: {}]
  %s5 = inlined_call_operand.hbm [shape: f32[16,128], index: 5, kind: output, shape index: {}]
  %s6 = sld [smem:[#allocation0]]
  $region65: #{tpu_custom_call.1} parent=0
    _
  %s8 = ssub.s32 1, %s6
  %s9 = scalar_select 0, %s8, %s6
  %v10 = vstv %s4
  %11 = vst [vmem:[#allocation2] sm:$0x1] %v10
  $region1: #{tpu_custom_call.1} parent=0
    #allocation3 [shape = 'u8[65536]{0}', space=vmem, size = 0x10000, scoped, tag = 'input window, operand 0']
    #allocation4 [shape = 's32[2]{0}', space=sflag, size = 0x8, scoped, tag = 'scoped memory for tpu_custom_call.1']
    #allocation5 [shape = 's32[2]{0}', space=sflag, size = 0x8, scoped, tag = 'scoped memory for tpu_custom_call.1']
    #allocation6 [shape = 'u8[8192]{0}', space=vmem, size = 0x2000, scoped, tag = 'input window, operand 1']
    #allocation7 [shape = 's32[2]{0}', space=sflag, size = 0x8, scoped, tag = 'scoped memory for tpu_custom_call.1']
    #allocation8 [shape = 'u8[65536]{0}', space=vmem, size = 0x10000, scoped, tag = 'input window, operand 2, single buffered']
    #allocation9 [shape = 'u8[8192]{0}', space=vmem, size = 0x2000, scoped, tag = 'output window, operand 0']
    %12 = vsyncpa [#allocation4], 0
    %s13 = scalar_lea.sflag [#allocation4], 1
    %14 = vsyncpa %s13, 0
    %15 = vsyncpa [#allocation7], 0
    %s16 = scalar_lea.sflag [#allocation7], 1
    %17 = vsyncpa %s16, 0
    %18 = vsyncpa [#allocation5], 0
    %s19 = scalar_lea.sflag [#allocation5], 1
    %20 = vsyncpa %s19, 0
    loop: start=0, step=1, limit=4
    $region2: #{tpu_custom_call.1} parent=1 // loop_pre_header
      _
    $region3: #{tpu_custom_call.1} parent=1 // loop_header
      %s22 = sphi 0, %s26
      %p23 = scmp.ge.s32.totalorder %s22, 4
      %s32 = sphi 0, %s34
      %s35 = sphi 0, %s32
      %s36 = sphi 0, %s35
      %s52 = sphi 0, %s36
      %s58 = sphi 0, %s60
      %s61 = sphi 0, %s58
      %s62 = sphi 0, %s61
      %s78 = sphi 0, %s62
      %s82 = sphi 0, %s82
      %s84 = sphi 0, %s82
      %s85 = sphi 0, %s84
      %s99 = sphi 0, %s85
      %s103 = sphi 0, %s103
      %s105 = sphi 0, %s103
      %s106 = sphi 0, %s105
      %s120 = sphi 0, %s106
      %s124 = sphi 0, %s124
      %s126 = sphi 0, %s124
      %s127 = sphi 0, %s126
      %s141 = sphi 0, %s127
      %s147 = sphi 0, %s149
      %s150 = sphi 0, %s147
      %s151 = sphi 0, %s150
      %s167 = sphi 0, %s151
    $region4: #{tpu_custom_call.1} parent=1 // loop_header_branch
      %25 = sbr.rel (%p23) target = $region8
    $region5: #{tpu_custom_call.1} parent=1 // loop_body
      %s27 = ssub.s32 %s22, 1
      %s28 = ssub.s32 %s22, 2
      %s29 = sadd.s32 %s22, 1
      %s30 = ssub.s32 %s22, %s29
      %p31 = scmp.eq.s32.totalorder %s30, 0
      %s33 = sadd.s32 %s32, 1
      %s34 = scalar_select %p31, %s32, %s33
      %p37 = pneg %p31
      %p38 = scmp.eq.s32.totalorder %s22, 1
      %p39 = por %p37, %p38
      %p40 = scmp.ne.s32.totalorder %s32, %s35
      %p41 = scmp.eq.s32.totalorder %s22, 0
      %p42 = por %p40, %p41
      %p43 = scmp.ne.s32.totalorder %s32, %s35
      %p44 = scmp.eq.s32.totalorder %s27, 1
      %p45 = por %p43, %p44
      %p46 = scmp.ne.s32.totalorder %s35, %s36
      %p47 = scmp.eq.s32.totalorder %s27, 0
      %p48 = por %p46, %p47
      %p49 = scmp.ne.s32.totalorder %s35, %s36
      %p50 = scmp.eq.s32.totalorder %s28, 1
      %p51 = por %p49, %p50
      %p53 = scmp.ne.s32.totalorder %s36, %s52
      %p54 = scmp.eq.s32.totalorder %s28, 0
      %p55 = por %p53, %p54
      %s56 = ssub.s32 %s22, %s29
      %p57 = scmp.eq.s32.totalorder %s56, 0
      %s59 = sadd.s32 %s58, 1
      %s60 = scalar_select %p57, %s58, %s59
      %p63 = pneg %p57
      %p64 = scmp.eq.s32.totalorder %s22, 1
      %p65 = por %p63, %p64
      %p66 = scmp.ne.s32.totalorder %s58, %s61
      %p67 = scmp.eq.s32.totalorder %s22, 0
      %p68 = por %p66, %p67
      %p69 = scmp.ne.s32.totalorder %s58, %s61
      %p70 = scmp.eq.s32.totalorder %s27, 1
      %p71 = por %p69, %p70
      %p72 = scmp.ne.s32.totalorder %s61, %s62
      %p73 = scmp.eq.s32.totalorder %s27, 0
      %p74 = por %p72, %p73
      %p75 = scmp.ne.s32.totalorder %s61, %s62
      %p76 = scmp.eq.s32.totalorder %s28, 1
      %p77 = por %p75, %p76
      %p79 = scmp.ne.s32.totalorder %s62, %s78
      %p80 = scmp.eq.s32.totalorder %s28, 0
      %p81 = por %p79, %p80
      %s83 = sadd.s32 %s82, 1
      %p86 = scmp.eq.s32.totalorder %s22, 1
      %p87 = scmp.ne.s32.totalorder %s82, %s84
      %p88 = scmp.eq.s32.totalorder %s22, 0
      %p89 = por %p87, %p88
      %p90 = scmp.ne.s32.totalorder %s82, %s84
      %p91 = scmp.eq.s32.totalorder %s27, 1
      %p92 = por %p90, %p91
      %p93 = scmp.ne.s32.totalorder %s84, %s85
      %p94 = scmp.eq.s32.totalorder %s27, 0
      %p95 = por %p93, %p94
      %p96 = scmp.ne.s32.totalorder %s84, %s85
      %p97 = scmp.eq.s32.totalorder %s28, 1
      %p98 = por %p96, %p97
      %p100 = scmp.ne.s32.totalorder %s85, %s99
      %p101 = scmp.eq.s32.totalorder %s28, 0
      %p102 = por %p100, %p101
      %s104 = sadd.s32 %s103, 1
      %p107 = scmp.eq.s32.totalorder %s22, 1
      %p108 = scmp.ne.s32.totalorder %s103, %s105
      %p109 = scmp.eq.s32.totalorder %s22, 0
      %p110 = por %p108, %p109
      %p111 = scmp.ne.s32.totalorder %s103, %s105
      %p112 = scmp.eq.s32.totalorder %s27, 1
      %p113 = por %p111, %p112
      %p114 = scmp.ne.s32.totalorder %s105, %s106
      %p115 = scmp.eq.s32.totalorder %s27, 0
      %p116 = por %p114, %p115
      %p117 = scmp.ne.s32.totalorder %s105, %s106
      %p118 = scmp.eq.s32.totalorder %s28, 1
      %p119 = por %p117, %p118
      %p121 = scmp.ne.s32.totalorder %s106, %s120
      %p122 = scmp.eq.s32.totalorder %s28, 0
      %p123 = por %p121, %p122
      %s125 = sadd.s32 %s124, 1
      %p128 = scmp.eq.s32.totalorder %s22, 1
      %p129 = scmp.ne.s32.totalorder %s124, %s126
      %p130 = scmp.eq.s32.totalorder %s22, 0
      %p131 = por %p129, %p130
      %p132 = scmp.ne.s32.totalorder %s124, %s126
      %p133 = scmp.eq.s32.totalorder %s27, 1
      %p134 = por %p132, %p133
      %p135 = scmp.ne.s32.totalorder %s126, %s127
      %p136 = scmp.eq.s32.totalorder %s27, 0
      %p137 = por %p135, %p136
      %p138 = scmp.ne.s32.totalorder %s126, %s127
      %p139 = scmp.eq.s32.totalorder %s28, 1
      %p140 = por %p138, %p139
      %p142 = scmp.ne.s32.totalorder %s127, %s141
      %p143 = scmp.eq.s32.totalorder %s28, 0
      %p144 = por %p142, %p143
      %s145 = ssub.s32 %s22, %s29
      %p146 = scmp.eq.s32.totalorder %s145, 0
      %s148 = sadd.s32 %s147, 1
      %s149 = scalar_select %p146, %s147, %s148
      %p152 = pneg %p146
      %p153 = scmp.eq.s32.totalorder %s22, 1
      %p154 = por %p152, %p153
      %p155 = scmp.ne.s32.totalorder %s147, %s150
      %p156 = scmp.eq.s32.totalorder %s22, 0
      %p157 = por %p155, %p156
      %p158 = scmp.ne.s32.totalorder %s147, %s150
      %p159 = scmp.eq.s32.totalorder %s27, 1
      %p160 = por %p158, %p159
      %p161 = scmp.ne.s32.totalorder %s150, %s151
      %p162 = scmp.eq.s32.totalorder %s27, 0
      %p163 = por %p161, %p162
      %p164 = scmp.ne.s32.totalorder %s150, %s151
      %p165 = scmp.eq.s32.totalorder %s28, 1
      %p166 = por %p164, %p165
      %p168 = scmp.ne.s32.totalorder %s151, %s167
      %p169 = scmp.eq.s32.totalorder %s28, 0
      %p170 = por %p168, %p169
      %p171 = scmp.le.s32.totalorder 1, %s22
      %p172 = scmp.lt.s32.totalorder %s22, 3
      %p173 = pnand %p171, %p172
      %p174 = pneg %p173
      // Predicated region
      $region9: #{tpu_custom_call.1} parent=5 // pred_check
        _
      $region10: #{tpu_custom_call.1} parent=5 // pred_check_branch
        %176 = sbr.rel (%p173) target = $region12
      $region11: #{tpu_custom_call.1} parent=5 // pred_region
        %s177 = ssub.s32 %s22, 1
        // Predicated region
        $region13: #{tpu_custom_call.1} parent=11 // pred_check
          %p178 = pneg %p95
        $region14: #{tpu_custom_call.1} parent=11 // pred_check_branch
          %180 = sbr.rel (%p178) target = $region16
        $region15: #{tpu_custom_call.1} parent=11 // pred_region
          %182 = vsyncadd [#allocation7], 0
          %s183 = sshll.u32 %s2, 4
          %s184 = int_to_ptr.hbm [resolvable:$true] %s183
          %s185 = sshll.u32 [#allocation8], 4
          %s186 = int_to_ptr.vmem [resolvable:$true] %s185
          %191 = dma.hbm_to_vmem [thread:$0]  %s184, 2048, %s186, [#allocation7], 128, 128, 8
        $region16: #{tpu_custom_call.1} parent=11 // pred_fallthru
          _
        // Predicated region
        $region17: #{tpu_custom_call.1} parent=11 // pred_check
          %p192 = pneg %p116
        $region18: #{tpu_custom_call.1} parent=11 // pred_check_branch
          %194 = sbr.rel (%p192) target = $region20
        $region19: #{tpu_custom_call.1} parent=11 // pred_region
          _
        $region20: #{tpu_custom_call.1} parent=11 // pred_fallthru
          _
        // Predicated region
        $region21: #{tpu_custom_call.1} parent=11 // pred_check
          %p195 = pneg %p137
        $region22: #{tpu_custom_call.1} parent=11 // pred_check_branch
          %197 = sbr.rel (%p195) target = $region24
        $region23: #{tpu_custom_call.1} parent=11 // pred_region
          _
        $region24: #{tpu_custom_call.1} parent=11 // pred_fallthru
          _
      $region12: #{tpu_custom_call.1} parent=5 // pred_fallthru
        _
      %p198 = scmp.lt.s32.totalorder %s22, 2
      // Predicated region
      $region25: #{tpu_custom_call.1} parent=5 // pred_check
        %p199 = pneg %p198
      $region26: #{tpu_custom_call.1} parent=5 // pred_check_branch
        %201 = sbr.rel (%p199) target = $region28
      $region27: #{tpu_custom_call.1} parent=5 // pred_region
        // Predicated region
        $region29: #{tpu_custom_call.1} parent=27 // pred_check
          %p202 = pneg %p42
        $region30: #{tpu_custom_call.1} parent=27 // pred_check_branch
          %204 = sbr.rel (%p202) target = $region32
        $region31: #{tpu_custom_call.1} parent=27 // pred_region
          %s205 = sand.u32 %s32, 1
          %s206 = scalar_lea.sflag [#allocation4], %s205
          %s207 = sand.u32 %s32, 1
          %s208 = smul.addr %s207, 64
          %s209 = scalar_lea.vmem [#allocation3], %s208
          %s210 = smul.u32 8, %s22
          %212 = vsyncadd %s206, 0
          %s213 = smul.addr %s210, 8
          %s214 = scalar_lea.hbm %s0, %s213
          %s215 = sshll.u32 %s214, 4
          %s216 = int_to_ptr.hbm [resolvable:$true] %s215
          %s217 = sshll.u32 %s209, 4
          %s218 = int_to_ptr.vmem [resolvable:$true] %s217
          %223 = dma.hbm_to_vmem [thread:$0]  %s216, 1024, %s218, %s206, 128, 128, 8
        $region32: #{tpu_custom_call.1} parent=27 // pred_fallthru
          _
        // Predicated region
        $region33: #{tpu_custom_call.1} parent=27 // pred_check
          %p224 = pneg %p68
        $region34: #{tpu_custom_call.1} parent=27 // pred_check_branch
          %226 = sbr.rel (%p224) target = $region36
        $region35: #{tpu_custom_call.1} parent=27 // pred_region
          %s227 = sand.u32 %s22, 1
          %s228 = scalar_lea.sflag [#allocation7], %s227
          %s229 = sand.u32 %s58, 1
          %s230 = smul.addr %s229, 8
          %s231 = scalar_lea.vmem [#allocation6], %s230
          %233 = vsyncadd %s228, 0
          %s234 = smul.addr %s22, 8
          %s235 = scalar_lea.hbm %s1, %s234
          %s237 = sshll.u32 %s235, 4
          %s238 = int_to_ptr.hbm [resolvable:$true] %s237
          %s239 = sshll.u32 %s231, 4
          %s240 = int_to_ptr.vmem [resolvable:$true] %s239
          %242 = dma.hbm_to_vmem [thread:$0]  %s238, 128, %s240, %s228
        $region36: #{tpu_custom_call.1} parent=27 // pred_fallthru
          _
      $region28: #{tpu_custom_call.1} parent=5 // pred_fallthru
        _
      %p243 = scmp.le.s32.totalorder 1, %s22
      %p244 = scmp.lt.s32.totalorder %s22, 3
      %p245 = pnand %p243, %p244
      %p246 = pneg %p245
      // Predicated region
      $region37: #{tpu_custom_call.1} parent=5 // pred_check
        _
      $region38: #{tpu_custom_call.1} parent=5 // pred_check_branch
        %248 = sbr.rel (%p245) target = $region40
      $region39: #{tpu_custom_call.1} parent=5 // pred_region
        %s249 = ssub.s32 %s22, 1
        %s250 = sand.u32 %s35, 1
        %s251 = scalar_lea.sflag [#allocation4], %s250
        %s252 = sand.u32 %s35, 1
        %s253 = smul.addr %s252, 64
        %s254 = scalar_lea.vmem [#allocation3], %s253
        // Predicated region
        $region41: #{tpu_custom_call.1} parent=39 // pred_check
          %p255 = pneg %p48
        $region42: #{tpu_custom_call.1} parent=39 // pred_check_branch
          %257 = sbr.rel (%p255) target = $region44
        $region43: #{tpu_custom_call.1} parent=39 // pred_region
          %259 = dma.done %s251, 1024
        $region44: #{tpu_custom_call.1} parent=39 // pred_fallthru
          _
        %s260 = sand.u32 %s27, 1
        %s261 = scalar_lea.sflag [#allocation7], %s260
        %s262 = sand.u32 %s61, 1
        %s263 = smul.addr %s262, 8
        %s264 = scalar_lea.vmem [#allocation6], %s263
        // Predicated region
        $region45: #{tpu_custom_call.1} parent=39 // pred_check
          %p265 = pneg %p74
        $region46: #{tpu_custom_call.1} parent=39 // pred_check_branch
          %267 = sbr.rel (%p265) target = $region48
        $region47: #{tpu_custom_call.1} parent=39 // pred_region
          %269 = dma.done %s261, 128
        $region48: #{tpu_custom_call.1} parent=39 // pred_fallthru
          _
        // Predicated region
        $region49: #{tpu_custom_call.1} parent=39 // pred_check
          %p270 = pneg %p95
        $region50: #{tpu_custom_call.1} parent=39 // pred_check_branch
          %272 = sbr.rel (%p270) target = $region52
        $region51: #{tpu_custom_call.1} parent=39 // pred_region
          %274 = dma.done [#allocation7], 2048
        $region52: #{tpu_custom_call.1} parent=39 // pred_fallthru
          _
        %s275 = sand.u32 %s35, 1
        %s276 = scalar_lea.sflag [#allocation4], %s275
        %s277 = sand.u32 %s35, 1
        %s278 = smul.addr %s277, 64
        %s279 = scalar_lea.vmem [#allocation3], %s278
        %p280 = pneg %p48
        %p281 = pneg %p45
        %s282 = sand.u32 %s27, 1
        %s283 = scalar_lea.sflag [#allocation7], %s282
        %s284 = sand.u32 %s61, 1
        %s285 = smul.addr %s284, 8
        %s286 = scalar_lea.vmem [#allocation6], %s285
        %p287 = pneg %p74
        %p288 = pneg %p71
        %p289 = pneg %p95
        %p290 = pneg %p92
        %p291 = pneg %p116
        %p292 = pneg %p113
        %p293 = pneg %p137
        %p294 = pneg %p134
        %p295 = pneg %p163
        %p296 = pneg %p160
        %s297 = sand.u32 %s150, 1
        %s298 = scalar_lea.sflag [#allocation5], %s297
        %s299 = sand.u32 %s150, 1
        %s300 = smul.addr %s299, 8
        %s301 = scalar_lea.vmem [#allocation9], %s300
        %s302 = smul.u32 8, %s27
        %v303 = vld [vmem:[%s254] sm:$0xff]
        %v304 = vld [vmem:[%s254 + $0x8] sm:$0xff]
        %v305 = vld [vmem:[%s254 + $0x10] sm:$0xff]
        %v306 = vld [vmem:[%s254 + $0x18] sm:$0xff]
        %v307 = vld [vmem:[%s254 + $0x20] sm:$0xff]
        %v308 = vld [vmem:[%s254 + $0x28] sm:$0xff]
        %v309 = vld [vmem:[%s254 + $0x30] sm:$0xff]
        %v310 = vld [vmem:[%s254 + $0x38] sm:$0xff]
        %v311 = vld [vmem:[#allocation8] sm:$0xff]
        %v312 = vld [vmem:[#allocation8 + $0x8] sm:$0xff]
        %v313 = vld [vmem:[#allocation8 + $0x10] sm:$0xff]
        %v314 = vld [vmem:[#allocation8 + $0x18] sm:$0xff]
        %v315 = vld [vmem:[#allocation8 + $0x20] sm:$0xff]
        %v316 = vld [vmem:[#allocation8 + $0x28] sm:$0xff]
        %v317 = vld [vmem:[#allocation8 + $0x30] sm:$0xff]
        %v318 = vld [vmem:[#allocation8 + $0x38] sm:$0xff]
        %v319 = vld [vmem:[#allocation8 + $0x40] sm:$0xff]
        %v320 = vld [vmem:[#allocation8 + $0x48] sm:$0xff]
        %v321 = vld [vmem:[#allocation8 + $0x50] sm:$0xff]
        %v322 = vld [vmem:[#allocation8 + $0x58] sm:$0xff]
        %v323 = vld [vmem:[#allocation8 + $0x60] sm:$0xff]
        %v324 = vld [vmem:[#allocation8 + $0x68] sm:$0xff]
        %v325 = vld [vmem:[#allocation8 + $0x70] sm:$0xff]
        %v326 = vld [vmem:[#allocation8 + $0x78] sm:$0xff]
        %327 = vmatpush.msra.mxu0 %v326
        %328 = vmatpush.msra.mxu0 %v325
        %329 = vmatpush.msra.mxu0 %v324
        %330 = vmatpush.msra.mxu0 %v323
        %331 = vmatpush.msra.mxu0 %v322
        %332 = vmatpush.msra.mxu0 %v321
        %333 = vmatpush.msra.mxu0 %v320
        %334 = vmatpush.msra.mxu0 %v319
        %335 = vmatpush.msra.mxu0 %v318
        %336 = vmatpush.msra.mxu0 %v317
        %337 = vmatpush.msra.mxu0 %v316
        %338 = vmatpush.msra.mxu0 %v315
        %339 = vmatpush.msra.mxu0 %v314
        %340 = vmatpush.msra.mxu0 %v313
        %341 = vmatpush.msra.mxu0 %v312
        %342 = vmatpush.msra.mxu0 %v311
        %343 = vmatmul.f32.gmra.mxu0 %v303
        %v344 = vpop.f32.mrf.mxu0
        %v345 = vadd.f32 0.0, %v344
        %346 = vmatmul.f32.gmra.mxu0 %v304
        %v347 = vpop.f32.mrf.mxu0
        %v348 = vadd.f32 0.0, %v347
        %349 = vmatmul.f32.gmra.mxu0 %v305
        %v350 = vpop.f32.mrf.mxu0
        %v351 = vadd.f32 0.0, %v350
        %352 = vmatmul.f32.gmra.mxu0 %v306
        %v353 = vpop.f32.mrf.mxu0
        %v354 = vadd.f32 0.0, %v353
        %355 = vmatmul.f32.gmra.mxu0 %v307
        %v356 = vpop.f32.mrf.mxu0
        %v357 = vadd.f32 0.0, %v356
        %358 = vmatmul.f32.gmra.mxu0 %v308
        %v359 = vpop.f32.mrf.mxu0
        %v360 = vadd.f32 0.0, %v359
        %361 = vmatmul.f32.gmra.mxu0 %v309
        %v362 = vpop.f32.mrf.mxu0
        %v363 = vadd.f32 0.0, %v362
        %364 = vmatmul.f32.gmra.mxu0 %v310
        %v365 = vpop.f32.mrf.mxu0
        %v366 = vadd.f32 0.0, %v365
        %367 = vdwg.mxu0
        %v368 = vld [vmem:[%s264] sm:$0xff]
        %v370 = vrot.slane %v368, 1
        %v371 = vrot.slane %v368, 2
        %v372 = vrot.slane %v368, 3
        %v373 = vrot.slane %v368, 4
        %v374 = vrot.slane %v368, 5
        %v375 = vrot.slane %v368, 6
        %v376 = vrot.slane %v368, 7
        %v377 = vperm.slane %v368, 0
        %v378 = vperm.slane %v370, 0
        %v379 = vperm.slane %v371, 0
        %v380 = vperm.slane %v372, 0
        %v381 = vperm.slane %v373, 0
        %v382 = vperm.slane %v374, 0
        %v383 = vperm.slane %v375, 0
        %v384 = vperm.slane %v376, 0
        %v393 = vadd.f32 %v345, %v377
        %v394 = vadd.f32 %v348, %v378
        %v395 = vadd.f32 %v351, %v379
        %v396 = vadd.f32 %v354, %v380
        %v397 = vadd.f32 %v357, %v381
        %v398 = vadd.f32 %v360, %v382
        %v399 = vadd.f32 %v363, %v383
        %v400 = vadd.f32 %v366, %v384
        %v401 = vmax.f32 %v393, 0.0
        %v402 = vmax.f32 %v394, 0.0
        %v403 = vmax.f32 %v395, 0.0
        %v404 = vmax.f32 %v396, 0.0
        %v405 = vmax.f32 %v397, 0.0
        %v406 = vmax.f32 %v398, 0.0
        %v407 = vmax.f32 %v399, 0.0
        %v408 = vmax.f32 %v400, 0.0
        %v409 = vld [vmem:[%s3] sm:$0x1]
        %v411 = vperm.slane %v409, 0
        %v413 = vmul.f32 %v401, %v411
        %v414 = vmul.f32 %v402, %v411
        %v415 = vmul.f32 %v403, %v411
        %v416 = vmul.f32 %v404, %v411
        %v417 = vmul.f32 %v405, %v411
        %v418 = vmul.f32 %v406, %v411
        %v419 = vmul.f32 %v407, %v411
        %v420 = vmul.f32 %v408, %v411
        %421 = vadd.xlane.f32.xlu0 %v413
        %v422 = vpop.xlane.xlu0 %421
        %423 = vadd.xlane.f32.xlu0 %v414
        %v424 = vpop.xlane.xlu0 %423
        %425 = vadd.xlane.f32.xlu0 %v415
        %v426 = vpop.xlane.xlu0 %425
        %427 = vadd.xlane.f32.xlu0 %v416
        %v428 = vpop.xlane.xlu0 %427
        %429 = vadd.xlane.f32.xlu0 %v417
        %v430 = vpop.xlane.xlu0 %429
        %431 = vadd.xlane.f32.xlu0 %v418
        %v432 = vpop.xlane.xlu0 %431
        %433 = vadd.xlane.f32.xlu0 %v419
        %v434 = vpop.xlane.xlu0 %433
        %435 = vadd.xlane.f32.xlu0 %v420
        %v436 = vpop.xlane.xlu0 %435
        %v437 = vld [vmem:[#allocation2] sm:$0x1]
        %v439 = vperm.slane %v437, 0
        %440 = vset.pattern.permute.xlu0 0
        %441 = vperm.xlu0 %440, %v439
        %v442 = vpop.permute.xlu0 %441
        %v444 = vadd.f32 %v422, %v442
        %v445 = vadd.f32 %v424, %v442
        %v446 = vadd.f32 %v426, %v442
        %v447 = vadd.f32 %v428, %v442
        %v448 = vadd.f32 %v430, %v442
        %v449 = vadd.f32 %v432, %v442
        %v450 = vadd.f32 %v434, %v442
        %v451 = vadd.f32 %v436, %v442
        %v460 = vlaneseq
        %v461 = vand.u32 %v460, 127
        %v462 = vperm.slane %v444, %v461
        %v463 = vperm.slane %v445, %v461
        %v464 = vperm.slane %v446, %v461
        %v465 = vperm.slane %v447, %v461
        %v466 = vperm.slane %v448, %v461
        %v467 = vperm.slane %v449, %v461
        %v468 = vperm.slane %v450, %v461
        %v469 = vperm.slane %v451, %v461
        %vm470 = vcmask 1041409
        %v471 = vsel %vm470, %v463, %v462
        %vm472 = vcmask 1042434
        %v473 = vsel %vm472, %v464, %v471
        %vm474 = vcmask 1043459
        %v475 = vsel %vm474, %v465, %v473
        %vm476 = vcmask 1044484
        %v477 = vsel %vm476, %v466, %v475
        %vm478 = vcmask 1045509
        %v479 = vsel %vm478, %v467, %v477
        %vm480 = vcmask 1046534
        %v481 = vsel %vm480, %v468, %v479
        %vm482 = vcmask 1047559
        %v483 = vsel %vm482, %v469, %v481
        %vm485 = vcmask 64512
        %v486 = vsel %vm485, %v483, -inf
        %487 = vmax.xlane.f32.xlu0 %v486
        %v488 = vpop.xlane.xlu0 %487
        %v490 = vperm.slane %v488, 0
        %v491 = vperm.slane %v488, 1
        %v492 = vperm.slane %v488, 2
        %v493 = vperm.slane %v488, 3
        %v494 = vperm.slane %v488, 4
        %v495 = vperm.slane %v488, 5
        %v496 = vperm.slane %v488, 6
        %v497 = vperm.slane %v488, 7
        %v506 = vsub.f32 %v444, %v490
        %v507 = vsub.f32 %v445, %v491
        %v508 = vsub.f32 %v446, %v492
        %v509 = vsub.f32 %v447, %v493
        %v510 = vsub.f32 %v448, %v494
        %v511 = vsub.f32 %v449, %v495
        %v512 = vsub.f32 %v450, %v496
        %v513 = vsub.f32 %v451, %v497
        %v514 = vmul.f32 %v506, 1.442695
        %v515 = vpow.pop %v514
        %v516 = vmul.f32 %v507, 1.442695
        %v517 = vpow.pop %v516
        %v518 = vmul.f32 %v508, 1.442695
        %v519 = vpow.pop %v518
        %v520 = vmul.f32 %v509, 1.442695
        %v521 = vpow.pop %v520
        %v522 = vmul.f32 %v510, 1.442695
        %v523 = vpow.pop %v522
        %v524 = vmul.f32 %v511, 1.442695
        %v525 = vpow.pop %v524
        %v526 = vmul.f32 %v512, 1.442695
        %v527 = vpow.pop %v526
        %v528 = vmul.f32 %v513, 1.442695
        %v529 = vpow.pop %v528
        %538 = vset.pattern.permute.xlu0 0
        %539 = vperm.xlu0 %538, %v515
        %v540 = vpop.permute.xlu0 %539
        %541 = vset.pattern.permute.xlu0 0
        %542 = vperm.xlu0 %541, %v517
        %v543 = vpop.permute.xlu0 %542
        %544 = vset.pattern.permute.xlu0 0
        %545 = vperm.xlu0 %544, %v519
        %v546 = vpop.permute.xlu0 %545
        %547 = vset.pattern.permute.xlu0 0
        %548 = vperm.xlu0 %547, %v521
        %v549 = vpop.permute.xlu0 %548
        %550 = vset.pattern.permute.xlu0 0
        %551 = vperm.xlu0 %550, %v523
        %v552 = vpop.permute.xlu0 %551
        %553 = vset.pattern.permute.xlu0 0
        %554 = vperm.xlu0 %553, %v525
        %v555 = vpop.permute.xlu0 %554
        %556 = vset.pattern.permute.xlu0 0
        %557 = vperm.xlu0 %556, %v527
        %v558 = vpop.permute.xlu0 %557
        %559 = vset.pattern.permute.xlu0 0
        %560 = vperm.xlu0 %559, %v529
        %v561 = vpop.permute.xlu0 %560
        %v562 = vperm.slane %v540, %v461
        %v563 = vperm.slane %v543, %v461
        %v564 = vperm.slane %v546, %v461
        %v565 = vperm.slane %v549, %v461
        %v566 = vperm.slane %v552, %v461
        %v567 = vperm.slane %v555, %v461
        %v568 = vperm.slane %v558, %v461
        %v569 = vperm.slane %v561, %v461
        %v570 = vsel %vm470, %v563, %v562
        %v571 = vsel %vm472, %v564, %v570
        %v572 = vsel %vm474, %v565, %v571
        %v573 = vsel %vm476, %v566, %v572
        %v574 = vsel %vm478, %v567, %v573
        %v575 = vsel %vm480, %v568, %v574
        %v576 = vsel %vm482, %v569, %v575
        %v578 = vsel %vm485, %v576, 0.0
        %579 = vadd.xlane.f32.xlu0 %v578
        %v580 = vpop.xlane.xlu0 %579
        %v581 = vrcp.pop %v580
        %v582 = vmul.f32 %v580, %v581
        %v583 = vsub.f32 1.0, %v582
        %v584 = vmul.f32 %v581, %v583
        %v585 = vadd.f32 %v581, %v584
        %vm586 = vweird.f32 %v580
        %vm587 = vweird.f32 %v581
        %vm588 = vmor %vm586, %vm587
        %v589 = vsel %vm588, %v581, %v585
        %v590 = vand.u32 2147483647, %v580
        %vm591 = vcmp.eq.f32.partialorder %v590, 8.507059e+37
        %v592 = vand.u32 %v580, 2147483648
        %v593 = vor.u32 1.1754944e-38, %v592
        %v594 = vsel %vm591, %v593, %v589
        %v596 = vperm.slane %v594, 0
        %v597 = vperm.slane %v594, 1
        %v598 = vperm.slane %v594, 2
        %v599 = vperm.slane %v594, 3
        %v600 = vperm.slane %v594, 4
        %v601 = vperm.slane %v594, 5
        %v602 = vperm.slane %v594, 6
        %v603 = vperm.slane %v594, 7
        %v612 = vmul.f32 %v515, %v596
        %v613 = vmul.f32 %v517, %v597
        %v614 = vmul.f32 %v519, %v598
        %v615 = vmul.f32 %v521, %v599
        %v616 = vmul.f32 %v523, %v600
        %v617 = vmul.f32 %v525, %v601
        %v618 = vmul.f32 %v527, %v602
        %v619 = vmul.f32 %v529, %v603
        %621 = vset.pattern.permute.xlu0 0
        %622 = vperm.xlu0 %621, %v612
        %v623 = vpop.permute.xlu0 %622
        %v624 = vperm.slane %v623, %v461
        %v625 = vsel %vm485, %v624, 0
        %627 = vmatpush.msra.mxu0 0.0
        %628 = vmatpush.msra.mxu0 0.0
        %629 = vmatpush.msra.mxu0 0.0
        %630 = vmatpush.msra.mxu0 0.0
        %631 = vmatpush.msra.mxu0 0.0
        %632 = vmatpush.msra.mxu0 0.0
        %633 = vmatpush.msra.mxu0 0.0
        %634 = vmatpush.msra.mxu0 0.0
        %635 = vmatpush.msra.mxu0 0.0
        %636 = vmatpush.msra.mxu0 0.0
        %637 = vmatpush.msra.mxu0 0.0
        %638 = vmatpush.msra.mxu0 0.0
        %639 = vmatpush.msra.mxu0 0.0
        %640 = vmatpush.msra.mxu0 0.0
        %641 = vmatpush.msra.mxu0 0.0
        %642 = vmatpush.msra.mxu0 %v303
        %643 = vmatmul.f32.gmra.mxu0 %v625
        %v644 = vpop.f32.mrf.mxu0
        %v645 = vadd.f32 0.0, %v644
        %646 = vdwg.mxu0
        %648 = vset.pattern.permute.xlu0 0
        %649 = vperm.xlu0 %648, %v613
        %v650 = vpop.permute.xlu0 %649
        %v651 = vperm.slane %v650, %v461
        %v652 = vsel %vm485, %v651, 0
        %654 = vmatpush.msra.mxu0 0.0
        %655 = vmatpush.msra.mxu0 0.0
        %656 = vmatpush.msra.mxu0 0.0
        %657 = vmatpush.msra.mxu0 0.0
        %658 = vmatpush.msra.mxu0 0.0
        %659 = vmatpush.msra.mxu0 0.0
        %660 = vmatpush.msra.mxu0 0.0
        %661 = vmatpush.msra.mxu0 0.0
        %662 = vmatpush.msra.mxu0 0.0
        %663 = vmatpush.msra.mxu0 0.0
        %664 = vmatpush.msra.mxu0 0.0
        %665 = vmatpush.msra.mxu0 0.0
        %666 = vmatpush.msra.mxu0 0.0
        %667 = vmatpush.msra.mxu0 0.0
        %668 = vmatpush.msra.mxu0 0.0
        %669 = vmatpush.msra.mxu0 %v304
        %670 = vmatmul.f32.gmra.mxu0 %v652
        %v671 = vpop.f32.mrf.mxu0
        %v672 = vadd.f32 0.0, %v671
        %673 = vdwg.mxu0
        %675 = vset.pattern.permute.xlu0 0
        %676 = vperm.xlu0 %675, %v614
        %v677 = vpop.permute.xlu0 %676
        %v678 = vperm.slane %v677, %v461
        %v679 = vsel %vm485, %v678, 0
        %681 = vmatpush.msra.mxu0 0.0
        %682 = vmatpush.msra.mxu0 0.0
        %683 = vmatpush.msra.mxu0 0.0
        %684 = vmatpush.msra.mxu0 0.0
        %685 = vmatpush.msra.mxu0 0.0
        %686 = vmatpush.msra.mxu0 0.0
        %687 = vmatpush.msra.mxu0 0.0
        %688 = vmatpush.msra.mxu0 0.0
        %689 = vmatpush.msra.mxu0 0.0
        %690 = vmatpush.msra.mxu0 0.0
        %691 = vmatpush.msra.mxu0 0.0
        %692 = vmatpush.msra.mxu0 0.0
        %693 = vmatpush.msra.mxu0 0.0
        %694 = vmatpush.msra.mxu0 0.0
        %695 = vmatpush.msra.mxu0 0.0
        %696 = vmatpush.msra.mxu0 %v305
        %697 = vmatmul.f32.gmra.mxu0 %v679
        %v698 = vpop.f32.mrf.mxu0
        %v699 = vadd.f32 0.0, %v698
        %700 = vdwg.mxu0
        %702 = vset.pattern.permute.xlu0 0
        %703 = vperm.xlu0 %702, %v615
        %v704 = vpop.permute.xlu0 %703
        %v705 = vperm.slane %v704, %v461
        %v706 = vsel %vm485, %v705, 0
        %708 = vmatpush.msra.mxu0 0.0
        %709 = vmatpush.msra.mxu0 0.0
        %710 = vmatpush.msra.mxu0 0.0
        %711 = vmatpush.msra.mxu0 0.0
        %712 = vmatpush.msra.mxu0 0.0
        %713 = vmatpush.msra.mxu0 0.0
        %714 = vmatpush.msra.mxu0 0.0
        %715 = vmatpush.msra.mxu0 0.0
        %716 = vmatpush.msra.mxu0 0.0
        %717 = vmatpush.msra.mxu0 0.0
        %718 = vmatpush.msra.mxu0 0.0
        %719 = vmatpush.msra.mxu0 0.0
        %720 = vmatpush.msra.mxu0 0.0
        %721 = vmatpush.msra.mxu0 0.0
        %722 = vmatpush.msra.mxu0 0.0
        %723 = vmatpush.msra.mxu0 %v306
        %724 = vmatmul.f32.gmra.mxu0 %v706
        %v725 = vpop.f32.mrf.mxu0
        %v726 = vadd.f32 0.0, %v725
        %727 = vdwg.mxu0
        %729 = vset.pattern.permute.xlu0 0
        %730 = vperm.xlu0 %729, %v616
        %v731 = vpop.permute.xlu0 %730
        %v732 = vperm.slane %v731, %v461
        %v733 = vsel %vm485, %v732, 0
        %735 = vmatpush.msra.mxu0 0.0
        %736 = vmatpush.msra.mxu0 0.0
        %737 = vmatpush.msra.mxu0 0.0
        %738 = vmatpush.msra.mxu0 0.0
        %739 = vmatpush.msra.mxu0 0.0
        %740 = vmatpush.msra.mxu0 0.0
        %741 = vmatpush.msra.mxu0 0.0
        %742 = vmatpush.msra.mxu0 0.0
        %743 = vmatpush.msra.mxu0 0.0
        %744 = vmatpush.msra.mxu0 0.0
        %745 = vmatpush.msra.mxu0 0.0
        %746 = vmatpush.msra.mxu0 0.0
        %747 = vmatpush.msra.mxu0 0.0
        %748 = vmatpush.msra.mxu0 0.0
        %749 = vmatpush.msra.mxu0 0.0
        %750 = vmatpush.msra.mxu0 %v307
        %751 = vmatmul.f32.gmra.mxu0 %v733
        %v752 = vpop.f32.mrf.mxu0
        %v753 = vadd.f32 0.0, %v752
        %754 = vdwg.mxu0
        %756 = vset.pattern.permute.xlu0 0
        %757 = vperm.xlu0 %756, %v617
        %v758 = vpop.permute.xlu0 %757
        %v759 = vperm.slane %v758, %v461
        %v760 = vsel %vm485, %v759, 0
        %762 = vmatpush.msra.mxu0 0.0
        %763 = vmatpush.msra.mxu0 0.0
        %764 = vmatpush.msra.mxu0 0.0
        %765 = vmatpush.msra.mxu0 0.0
        %766 = vmatpush.msra.mxu0 0.0
        %767 = vmatpush.msra.mxu0 0.0
        %768 = vmatpush.msra.mxu0 0.0
        %769 = vmatpush.msra.mxu0 0.0
        %770 = vmatpush.msra.mxu0 0.0
        %771 = vmatpush.msra.mxu0 0.0
        %772 = vmatpush.msra.mxu0 0.0
        %773 = vmatpush.msra.mxu0 0.0
        %774 = vmatpush.msra.mxu0 0.0
        %775 = vmatpush.msra.mxu0 0.0
        %776 = vmatpush.msra.mxu0 0.0
        %777 = vmatpush.msra.mxu0 %v308
        %778 = vmatmul.f32.gmra.mxu0 %v760
        %v779 = vpop.f32.mrf.mxu0
        %v780 = vadd.f32 0.0, %v779
        %781 = vdwg.mxu0
        %783 = vset.pattern.permute.xlu0 0
        %784 = vperm.xlu0 %783, %v618
        %v785 = vpop.permute.xlu0 %784
        %v786 = vperm.slane %v785, %v461
        %v787 = vsel %vm485, %v786, 0
        %789 = vmatpush.msra.mxu0 0.0
        %790 = vmatpush.msra.mxu0 0.0
        %791 = vmatpush.msra.mxu0 0.0
        %792 = vmatpush.msra.mxu0 0.0
        %793 = vmatpush.msra.mxu0 0.0
        %794 = vmatpush.msra.mxu0 0.0
        %795 = vmatpush.msra.mxu0 0.0
        %796 = vmatpush.msra.mxu0 0.0
        %797 = vmatpush.msra.mxu0 0.0
        %798 = vmatpush.msra.mxu0 0.0
        %799 = vmatpush.msra.mxu0 0.0
        %800 = vmatpush.msra.mxu0 0.0
        %801 = vmatpush.msra.mxu0 0.0
        %802 = vmatpush.msra.mxu0 0.0
        %803 = vmatpush.msra.mxu0 0.0
        %804 = vmatpush.msra.mxu0 %v309
        %805 = vmatmul.f32.gmra.mxu0 %v787
        %v806 = vpop.f32.mrf.mxu0
        %v807 = vadd.f32 0.0, %v806
        %808 = vdwg.mxu0
        %810 = vset.pattern.permute.xlu0 0
        %811 = vperm.xlu0 %810, %v619
        %v812 = vpop.permute.xlu0 %811
        %v813 = vperm.slane %v812, %v461
        %v814 = vsel %vm485, %v813, 0
        %816 = vmatpush.msra.mxu0 0.0
        %817 = vmatpush.msra.mxu0 0.0
        %818 = vmatpush.msra.mxu0 0.0
        %819 = vmatpush.msra.mxu0 0.0
        %820 = vmatpush.msra.mxu0 0.0
        %821 = vmatpush.msra.mxu0 0.0
        %822 = vmatpush.msra.mxu0 0.0
        %823 = vmatpush.msra.mxu0 0.0
        %824 = vmatpush.msra.mxu0 0.0
        %825 = vmatpush.msra.mxu0 0.0
        %826 = vmatpush.msra.mxu0 0.0
        %827 = vmatpush.msra.mxu0 0.0
        %828 = vmatpush.msra.mxu0 0.0
        %829 = vmatpush.msra.mxu0 0.0
        %830 = vmatpush.msra.mxu0 0.0
        %831 = vmatpush.msra.mxu0 %v310
        %832 = vmatmul.f32.gmra.mxu0 %v814
        %v833 = vpop.f32.mrf.mxu0
        %v834 = vadd.f32 0.0, %v833
        %835 = vdwg.mxu0
        %v844 = vrot.slane %v672, 7
        %v845 = vsel %vm470, %v844, %v645
        %v846 = vrot.slane %v699, 6
        %v847 = vsel %vm472, %v846, %v845
        %v848 = vrot.slane %v726, 5
        %v849 = vsel %vm474, %v848, %v847
        %v850 = vrot.slane %v753, 4
        %v851 = vsel %vm476, %v850, %v849
        %v852 = vrot.slane %v780, 3
        %v853 = vsel %vm478, %v852, %v851
        %v854 = vrot.slane %v807, 2
        %v855 = vsel %vm480, %v854, %v853
        %v856 = vrot.slane %v834, 1
        %v857 = vsel %vm482, %v856, %v855
        %859 = vst [vmem:[%s301] sm:$0xff] %v857
        %s860 = sand.u32 %s150, 1
        %s861 = scalar_lea.sflag [#allocation5], %s860
        %s862 = sand.u32 %s150, 1
        %s863 = smul.addr %s862, 8
        %s864 = scalar_lea.vmem [#allocation9], %s863
        // Predicated region
        $region53: #{tpu_custom_call.1} parent=39 // pred_check
          %p865 = pneg %p160
        $region54: #{tpu_custom_call.1} parent=39 // pred_check_branch
          %867 = sbr.rel (%p865) target = $region56
        $region55: #{tpu_custom_call.1} parent=39 // pred_region
          %869 = vsyncadd %s861, 0
          %s870 = smul.addr %s27, 8
          %s871 = scalar_lea.hbm %s5, %s870
          %s873 = sshll.u32 %s864, 4
          %s874 = int_to_ptr.vmem [resolvable:$true] %s873
          %s875 = sshll.u32 %s871, 4
          %s876 = int_to_ptr.hbm [resolvable:$true] %s875
          %878 = dma.vmem_to_hbm [thread:$0]  %s874, 128, %s876, %s861
        $region56: #{tpu_custom_call.1} parent=39 // pred_fallthru
          _
      $region40: #{tpu_custom_call.1} parent=5 // pred_fallthru
        _
      %p879 = scmp.le.s32.totalorder 2, %s22
      // Predicated region
      $region57: #{tpu_custom_call.1} parent=5 // pred_check
        %p880 = pneg %p879
      $region58: #{tpu_custom_call.1} parent=5 // pred_check_branch
        %882 = sbr.rel (%p880) target = $region60
      $region59: #{tpu_custom_call.1} parent=5 // pred_region
        %s883 = ssub.s32 %s22, 2
        // Predicated region
        $region61: #{tpu_custom_call.1} parent=59 // pred_check
          %p884 = pneg %p166
        $region62: #{tpu_custom_call.1} parent=59 // pred_check_branch
          %886 = sbr.rel (%p884) target = $region64
        $region63: #{tpu_custom_call.1} parent=59 // pred_region
          %s887 = sand.u32 %s151, 1
          %s888 = scalar_lea.sflag [#allocation5], %s887
          %s889 = sand.u32 %s151, 1
          %s890 = smul.addr %s889, 8
          %s891 = scalar_lea.vmem [#allocation9], %s890
          %893 = dma.done %s888, 128
        $region64: #{tpu_custom_call.1} parent=59 // pred_fallthru
          _
      $region60: #{tpu_custom_call.1} parent=5 // pred_fallthru
        _
    $region6: #{tpu_custom_call.1} parent=1 // loop_footer
      %s26 = sadd.s32 1, %s22
    $region7: #{tpu_custom_call.1} parent=1 // loop_footer_branch
      %21 = sbr.rel target = $region3
    $region8: #{tpu_custom_call.1} parent=1 // loop_exit
      _
    %894 = vsyncpa [#allocation4], 1
    %s895 = scalar_lea.sflag [#allocation4], 1
    %896 = vsyncpa %s895, 1
    %897 = vsyncpa [#allocation7], 1
    %s898 = scalar_lea.sflag [#allocation7], 1
    %899 = vsyncpa %s898, 1
    %900 = vsyncpa [#allocation5], 1
    %s901 = scalar_lea.sflag [#allocation5], 1
    %902 = vsyncpa %s901, 1

</llo_original>
